<compile_context>
chip_gen: v7x
topology: tpu7x:2x2x1
jax: 0.10.0
libtpu: 0.0.40
codegen_flags: <defaults>
</compile_context>

<pallas_src>
import jax
import jax.numpy as jnp
from jax.experimental import pallas as pl
from jax.experimental.pallas import tpu as pltpu

_SQRT_2_OVER_PI = 0.7978845608028654  # sqrt(2/pi)

_TARGET_BLOCK_BYTES = 4 << 20   # ~4 MiB/block: past the measured roofline plateau
_VMEM_LIMIT_BYTES = 32 << 20    # safe scoped-VMEM limit on v5e / v6e / v7x


def _gelu_kernel(x_ref, o_ref):
    x = x_ref[...].astype(jnp.float32)
    # 0.5 * x * (1 + tanh(sqrt(2/pi) * (x + 0.044715 * x^3)))
    # inner argument factored as x * (C1 + C2 * x^2) to trim VPU ops.
    c1 = jnp.float32(_SQRT_2_OVER_PI)
    c2 = jnp.float32(0.044715 * _SQRT_2_OVER_PI)
    inner = x * (c1 + c2 * (x * x))
    half_x = jnp.float32(0.5) * x
    y = half_x + half_x * jnp.tanh(inner)   # tanh -> EUP (free slot here)
    o_ref[...] = y.astype(o_ref.dtype)


def _cost(n, itemsize):
    return pl.CostEstimate(flops=8 * n, transcendentals=n,
                           bytes_accessed=2 * n * itemsize)


def _compiler_params():
    return pltpu.CompilerParams(dimension_semantics=("parallel",),
                                vmem_limit_bytes=_VMEM_LIMIT_BYTES)


def _gelu_2d(x2d):
    """Lane-dense path: width is a multiple of 128, tiled along rows."""
    rows, width = x2d.shape
    itemsize = jnp.dtype(x2d.dtype).itemsize

    # ~4 MiB blocks (row count a multiple of 8).
    block_rows = max(8, (_TARGET_BLOCK_BYTES // (width * itemsize)) // 8 * 8)
    # Aim for >=4 grid steps (>=2 per TensorCore on a 2-core chip) when possible.
    if rows >= 32:
        block_rows = min(block_rows, max(8, (rows // 4) // 8 * 8))
    if block_rows >= rows:
        block_rows = rows   # single full-extent block (legal for any row count)

    grid = (pl.cdiv(rows, block_rows),)
    return pl.pallas_call(
        _gelu_kernel,
        out_shape=jax.ShapeDtypeStruct((rows, width), x2d.dtype),
        grid_spec=pltpu.PrefetchScalarGridSpec(
            num_scalar_prefetch=0,
            grid=grid,
            in_specs=[pl.BlockSpec((block_rows, width), lambda i: (i, 0))],
            out_specs=pl.BlockSpec((block_rows, width), lambda i: (i, 0)),
        ),
        compiler_params=_compiler_params(),
        cost_estimate=_cost(rows * width, itemsize),
    )(x2d)


def _gelu_ragged(flat):
    """Ragged path (element count not a multiple of 128, rare): one pallas_call
    over a (1, n) view, chunked along lanes; Pallas masks the partial final
    block.  No concatenate / pad -> no extra HBM pass over the data."""
    n = flat.shape[0]
    itemsize = jnp.dtype(flat.dtype).itemsize
    chunk = max(128, (_TARGET_BLOCK_BYTES // itemsize) // 128 * 128)
    if chunk >= n:
        chunk = n           # full-extent block: legal for any size
    grid = (pl.cdiv(n, chunk),)
    out = pl.pallas_call(
        _gelu_kernel,
        out_shape=jax.ShapeDtypeStruct((1, n), flat.dtype),
        grid_spec=pltpu.PrefetchScalarGridSpec(
            num_scalar_prefetch=0,
            grid=grid,
            in_specs=[pl.BlockSpec((1, chunk), lambda i: (0, i))],
            out_specs=pl.BlockSpec((1, chunk), lambda i: (0, i)),
        ),
        compiler_params=_compiler_params(),
        cost_estimate=_cost(n, itemsize),
    )(flat.reshape(1, n))
    return out.reshape(n)


def _gelu_impl(x):
    n = x.size
    if n == 0:
        return x
    flat = x.reshape(-1)
    # Widest lane-dense width (multiple of 128) that evenly divides the count.
    for cand in (4096, 2048, 1024, 512, 256, 128):
        if n % cand == 0:
            return _gelu_2d(flat.reshape(n // cand, cand)).reshape(x.shape)
    return _gelu_ragged(flat).reshape(x.shape)


# Public entry point: kept under jit so the reshapes stay metadata-only.
gelu_pallas = jax.jit(_gelu_impl)


def gelu_ref(x):
    xf = x.astype(jnp.float32)
    c = jnp.float32(_SQRT_2_OVER_PI)
    return (0.5 * xf * (1.0 + jnp.tanh(c * (xf + 0.044715 * xf ** 3)))).astype(x.dtype)


if __name__ == "__main__":
    key = jax.random.PRNGKey(0)

    # Primary shape implied by the module's use in the GPT demo: [batch, seq, hidden].
    x = jax.random.normal(key, (2, 8, 32), dtype=jnp.float32)
    y = gelu_pallas(x)
    jax.block_until_ready(y)
    assert y.shape == x.shape and y.dtype == x.dtype
    assert jnp.allclose(y, gelu_ref(x), atol=1e-5, rtol=1e-5)

    # Multi-block grid path (still small: 1 MiB) — exercises >=4 grid steps.
    x2 = jax.random.normal(jax.random.PRNGKey(1), (8, 128, 256), dtype=jnp.float32)
    y2 = gelu_pallas(x2)
    jax.block_until_ready(y2)
    assert jnp.allclose(y2, gelu_ref(x2), atol=1e-5, rtol=1e-5)

    # Ragged element count (not a multiple of 128) — single-call masked path.
    x3 = jax.random.normal(jax.random.PRNGKey(2), (3, 7, 11), dtype=jnp.float32)
    y3 = gelu_pallas(x3)
    jax.block_until_ready(y3)
    assert jnp.allclose(y3, gelu_ref(x3), atol=1e-5, rtol=1e-5)

    print("KERNEL_OK")
</pallas_src>

<mosaic_0001>
module attributes {stable_mosaic.version = 11 : i64} {
  func.func @_gelu_kernel(%arg0: i32, %arg1: memref<1x512xf32, #tpu.memory_space<vmem>>, %arg2: memref<1x512xf32, #tpu.memory_space<vmem>>) attributes {dimension_semantics = [#tpu.dimension_semantics<parallel>], iteration_bounds = array<i64: 1>, scalar_prefetch = 0 : i64, scratch_operands = 0 : i64, tpu.core_type = #tpu.core_type<tc>, window_params = [{transform_indices = @transform_0, window_bounds = array<i64: 1, 512>}, {transform_indices = @transform_1, window_bounds = array<i64: 1, 512>}]} {
    %c0 = arith.constant 0 : index
    %c0_0 = arith.constant 0 : index
    %0 = vector.load %arg1[%c0, %c0_0] : memref<1x512xf32, #tpu.memory_space<vmem>>, vector<1x512xf32>
    %1 = arith.mulf %0, %0 : vector<1x512xf32>
    %cst = arith.constant 0.0356774069 : f32
    %2 = vector.broadcast %cst : f32 to vector<1x512xf32>
    %3 = arith.mulf %2, %1 : vector<1x512xf32>
    %cst_1 = arith.constant 0.797884583 : f32
    %4 = vector.broadcast %cst_1 : f32 to vector<1x512xf32>
    %5 = arith.addf %4, %3 : vector<1x512xf32>
    %6 = arith.mulf %0, %5 : vector<1x512xf32>
    %cst_2 = arith.constant 5.000000e-01 : f32
    %7 = vector.broadcast %cst_2 : f32 to vector<1x512xf32>
    %8 = arith.mulf %7, %0 : vector<1x512xf32>
    %9 = math.tanh %6 : vector<1x512xf32>
    %10 = arith.mulf %8, %9 : vector<1x512xf32>
    %11 = arith.addf %8, %10 : vector<1x512xf32>
    %c0_3 = arith.constant 0 : index
    %c0_4 = arith.constant 0 : index
    %12 = vector.load %arg2[%c0_3, %c0_4] : memref<1x512xf32, #tpu.memory_space<vmem>>, vector<1x512xf32>
    tpu.vector_store %arg2[%c0_3, %c0_4], %11 {strides = array<i32>} : memref<1x512xf32, #tpu.memory_space<vmem>>, vector<1x512xf32>,
    return
  }
  func.func @transform_0(%arg0: i32) -> (i32, i32) {
    %c0_i32 = arith.constant 0 : i32
    %c0_i32_0 = arith.constant 0 : i32
    return %arg0, %c0_i32 : i32, i32
  }
  func.func @transform_1(%arg0: i32) -> (i32, i32) {
    %c0_i32 = arith.constant 0 : i32
    %c0_i32_0 = arith.constant 0 : i32
    return %arg0, %c0_i32 : i32, i32
  }
}

</mosaic_0001>

<llo_original>
// kernel: _gelu_impl.1
$region0: #{_gelu_impl.1}
  #allocation0 [shape = 'u32[]', space=smem, size = 0x4, offset = 0x4, fixed_abs, tag = 'smem constant byte address 0x4 - core index']
  #allocation1 [shape = 'u32[144,128]{1,0:T(1,128)}', space=vmem, size = 0x12000, scoped, tag = 'internal scratch']
  %s0 = inlined_call_operand.vmem [shape: f32[1,512], index: 0, kind: input, shape index: {}]
  %s1 = inlined_call_operand.vmem [shape: f32[1,512], index: 1, kind: output, shape index: {}]
  %s2 = sld [smem:[#allocation0]]
  $region14: #{_gelu_impl.1} parent=0
    _
  %s4 = ssub.s32 1, %s2
  %s5 = scalar_select 0, %s4, %s2
  // Predicated region
  $region2: #{_gelu_impl.1} parent=0 // pred_check
    _
  $region3: #{_gelu_impl.1} parent=0 // pred_check_branch
    %7 = sbr.rel (0) target = $region5
  $region4: #{_gelu_impl.1} parent=0 // pred_region
    _
  $region5: #{_gelu_impl.1} parent=0 // pred_fallthru
    _
  %v8 = vld [vmem:[%s0] sm:$0xf]
  %v9 = vmul.f32 %v8, %v8
  %v10 = vmul.f32 %v9, 0.035677407
  %v11 = vadd.f32 %v10, 0.7978846
  %v12 = vmul.f32 %v8, %v11
  %v13 = vmul.f32 %v8, 0.5
  %v14 = vtanh.pop %v12
  %v15 = vmul.f32 %v13, %v14
  %v16 = vadd.f32 %v13, %v15
  %v17 = vlaneseq
  %vm18 = vcmp.ge.s32.totalorder %v17, 0
  %vm19 = vcmp.lt.s32.totalorder %v17, 512
  %vm20 = vmand %vm18, %vm19
  %21 = vst.msk [vmem:[%s1] sm:$0xf] %vm20, %v16
  // Predicated region
  $region6: #{_gelu_impl.1} parent=0 // pred_check
    _
  $region7: #{_gelu_impl.1} parent=0 // pred_check_branch
    %23 = sbr.rel (0) target = $region9
  $region8: #{_gelu_impl.1} parent=0 // pred_region
    _
  $region9: #{_gelu_impl.1} parent=0 // pred_fallthru
    _
  // Predicated region
  $region10: #{_gelu_impl.1} parent=0 // pred_check
    _
  $region11: #{_gelu_impl.1} parent=0 // pred_check_branch
    %25 = sbr.rel (0) target = $region13
  $region12: #{_gelu_impl.1} parent=0 // pred_region
    _
  $region13: #{_gelu_impl.1} parent=0 // pred_fallthru
    _

</llo_original>
